<compile_context>
chip_gen: v5e
topology: v5e:2x2
jax: 0.10.0
libtpu: 0.0.40
codegen_flags: <defaults>
</compile_context>

<pallas_src>
import jax
import jax.numpy as jnp
from jax.experimental import pallas as pl
from jax.experimental.pallas import tpu as pltpu

LANE = 128
_TARGET_BLOCK_BYTES = 1 << 20  # ~1 MiB per input block


def _flexisign_kernel(alpha_ref, x_ref, o_ref):
    # alpha lives in SMEM as a (1, 1) float32 scalar
    a = alpha_ref[0, 0]
    x = x_ref[...].astype(jnp.float32)
    o_ref[...] = (x / (1.0 + jnp.abs(a * x))).astype(o_ref.dtype)


def _choose_slab(n: int) -> tuple[int, int, int]:
    """Pick (rows, width, pad) for a lane-dense 2D slab of n elements."""
    for w in (8192, 4096, 2048, 1024, 512, 256, LANE):
        if n % w == 0:
            return n // w, w, 0
    # Fallback: element count not a multiple of 128 -> minimal pad to 128.
    pad = (-n) % LANE
    return (n + pad) // LANE, LANE, pad


def flexisign(x: jax.Array, alpha: jax.Array) -> jax.Array:
    """Apply Flexisign elementwise. x: any float array, alpha: scalar (shape (1,))."""
    orig_shape = x.shape
    orig_dtype = x.dtype

    flat = x.reshape(-1)
    n = flat.shape[0]

    m, w, n_pad = _choose_slab(n)
    if n_pad:
        # Rare path (n not a multiple of 128); pad is at most 127 elements.
        flat = jnp.pad(flat, (0, n_pad))
    x2d = flat.reshape(m, w)

    # Row tile: ~1 MiB blocks, sublane-aligned, with enough grid steps for
    # megacore sharding on v7x when the input is large.
    itemsize = jnp.dtype(x2d.dtype).itemsize
    target_rows = max(1, _TARGET_BLOCK_BYTES // (w * itemsize))
    if target_rows >= m:
        tile_m = m  # single block; block dim == full array dim is always legal
    else:
        tile_m = max(8, (target_rows // 8) * 8)
        if m >= 64:
            tile_m = min(tile_m, max(8, ((m // 8) // 8) * 8))

    grid = (pl.cdiv(m, tile_m),)

    alpha_smem = alpha.reshape(1, 1).astype(jnp.float32)

    out2d = pl.pallas_call(
        _flexisign_kernel,
        out_shape=jax.ShapeDtypeStruct((m, w), x2d.dtype),
        grid=grid,
        in_specs=[
            pl.BlockSpec(memory_space=pltpu.SMEM),          # alpha scalar (f32)
            pl.BlockSpec((tile_m, w), lambda i: (i, 0)),    # x tile
        ],
        out_specs=pl.BlockSpec((tile_m, w), lambda i: (i, 0)),
        compiler_params=pltpu.CompilerParams(
            dimension_semantics=("parallel",)
        ),
    )(alpha_smem, x2d)

    out = out2d.reshape(-1)
    if n_pad:
        out = out[:n]
    return out.reshape(orig_shape).astype(orig_dtype)


if __name__ == "__main__":
    key = jax.random.PRNGKey(0)
    # NCHW-style input consistent with a conv-net activation
    x = jax.random.normal(key, (2, 4, 16, 16), dtype=jnp.float32)

    # deterministic parameter init (matches nn.Parameter(torch.tensor([1.0])))
    alpha = jnp.array([1.0], dtype=jnp.float32)

    y = flexisign(x, alpha)
    y = jax.block_until_ready(y)

    # reference check in plain JAX
    y_ref = x / (1.0 + jnp.abs(alpha[0] * x))
    assert y.shape == x.shape and y.dtype == x.dtype
    assert jnp.allclose(y, y_ref, atol=1e-6, rtol=1e-6)

    print("KERNEL_OK")
</pallas_src>

<mosaic_0001>
module attributes {stable_mosaic.version = 11 : i64} {
  func.func @_flexisign_kernel(%arg0: i32, %arg1: memref<1x1xf32, #tpu.memory_space<smem>>, %arg2: memref<1x2048xf32, #tpu.memory_space<vmem>>, %arg3: memref<1x2048xf32, #tpu.memory_space<vmem>>) attributes {dimension_semantics = [#tpu.dimension_semantics<parallel>], iteration_bounds = array<i64: 1>, scalar_prefetch = 0 : i64, scratch_operands = 0 : i64, tpu.core_type = #tpu.core_type<tc>, window_params = [{transform_indices = @transform_0, window_bounds = array<i64: 1, 1>}, {transform_indices = @transform_1, window_bounds = array<i64: 1, 2048>}, {transform_indices = @transform_2, window_bounds = array<i64: 1, 2048>}]} {
    %c0 = arith.constant 0 : index
    %c0_0 = arith.constant 0 : index
    %0 = memref.load %arg1[%c0, %c0_0] : memref<1x1xf32, #tpu.memory_space<smem>>
    %c0_1 = arith.constant 0 : index
    %c0_2 = arith.constant 0 : index
    %1 = vector.load %arg2[%c0_1, %c0_2] : memref<1x2048xf32, #tpu.memory_space<vmem>>, vector<1x2048xf32>
    %2 = vector.broadcast %0 : f32 to vector<1x2048xf32>
    %3 = arith.mulf %2, %1 : vector<1x2048xf32>
    %4 = math.absf %3 : vector<1x2048xf32>
    %cst = arith.constant 1.000000e+00 : f32
    %5 = vector.broadcast %cst : f32 to vector<1x2048xf32>
    %6 = arith.addf %5, %4 : vector<1x2048xf32>
    %7 = arith.divf %1, %6 : vector<1x2048xf32>
    %c0_3 = arith.constant 0 : index
    %c0_4 = arith.constant 0 : index
    %8 = vector.load %arg3[%c0_3, %c0_4] : memref<1x2048xf32, #tpu.memory_space<vmem>>, vector<1x2048xf32>
    tpu.vector_store %arg3[%c0_3, %c0_4], %7 {strides = array<i32>} : memref<1x2048xf32, #tpu.memory_space<vmem>>, vector<1x2048xf32>,
    return
  }
  func.func @transform_0(%arg0: i32) -> (i32, i32) {
    %c0_i32 = arith.constant 0 : i32
    %c0_i32_0 = arith.constant 0 : i32
    %c0_i32_1 = arith.constant 0 : i32
    return %c0_i32, %c0_i32_0 : i32, i32
  }
  func.func @transform_1(%arg0: i32) -> (i32, i32) {
    %c0_i32 = arith.constant 0 : i32
    %c0_i32_0 = arith.constant 0 : i32
    return %arg0, %c0_i32 : i32, i32
  }
  func.func @transform_2(%arg0: i32) -> (i32, i32) {
    %c0_i32 = arith.constant 0 : i32
    %c0_i32_0 = arith.constant 0 : i32
    return %arg0, %c0_i32 : i32, i32
  }
}

</mosaic_0001>

<llo_original>
// kernel: tpu_custom_call.1
$region0: #{tpu_custom_call.1}
  #allocation0 [shape = 'u32[]', space=smem, size = 0x4, offset = 0x4, fixed_abs, tag = 'smem constant byte address 0x4 - core index']
  #allocation1 [shape = 'u32[72,128]{1,0:T(1,128)}', space=vmem, size = 0x9000, scoped, tag = 'internal scratch']
  #allocation2 [shape = 'f32[1,1]{1,0:T(1,128)S(6)}', space=smem, size = 0x200, scoped, tag = 'scoped memory for tpu_custom_call.1']
  %s0 = inlined_call_operand.<no memory space> [shape: f32[1,1], index: 0, kind: input, shape index: {}]
  %s1 = inlined_call_operand.hbm [shape: f32[1,2048], index: 1, kind: input, shape index: {}]
  %s2 = inlined_call_operand.hbm [shape: f32[1,2048], index: 2, kind: output, shape index: {}]
  %s3 = sld [smem:[#allocation0]]
  $region22: #{tpu_custom_call.1} parent=0
    _
  %s5 = ssub.s32 1, %s3
  %s6 = scalar_select 0, %s5, %s3
  %7 = sst [smem:[#allocation2]] %s0
  $region1: #{tpu_custom_call.1} parent=0
    #allocation3 [shape = 'u8[8192]{0}', space=vmem, size = 0x2000, scoped, tag = 'input window, operand 1, single buffered']
    #allocation4 [shape = 's32[1]{0}', space=sflag, size = 0x4, scoped, tag = 'scoped memory for tpu_custom_call.1']
    #allocation5 [shape = 's32[1]{0}', space=sflag, size = 0x4, scoped, tag = 'scoped memory for tpu_custom_call.1']
    #allocation6 [shape = 'u8[8192]{0}', space=vmem, size = 0x2000, scoped, tag = 'output window, operand 0, single buffered']
    %8 = vsyncpa [#allocation4], 0
    %9 = vsyncpa [#allocation5], 0
    // Predicated region
    $region2: #{tpu_custom_call.1} parent=1 // pred_check
      _
    $region3: #{tpu_custom_call.1} parent=1 // pred_check_branch
      %11 = sbr.rel (0) target = $region5
    $region4: #{tpu_custom_call.1} parent=1 // pred_region
      _
    $region5: #{tpu_custom_call.1} parent=1 // pred_fallthru
      _
    // Predicated region
    $region6: #{tpu_custom_call.1} parent=1 // pred_check
      _
    $region7: #{tpu_custom_call.1} parent=1 // pred_check_branch
      %13 = sbr.rel (0) target = $region9
    $region8: #{tpu_custom_call.1} parent=1 // pred_region
      %15 = vsyncadd [#allocation4], 0
      %s17 = sshll.u32 %s1, 4
      %s18 = int_to_ptr.hbm [resolvable:$true] %s17
      %s19 = sshll.u32 [#allocation3], 4
      %s20 = int_to_ptr.vmem [resolvable:$true] %s19
      %22 = dma.hbm_to_vmem [thread:$0]  %s18, 256, %s20, [#allocation4]
    $region9: #{tpu_custom_call.1} parent=1 // pred_fallthru
      _
    // Predicated region
    $region10: #{tpu_custom_call.1} parent=1 // pred_check
      _
    $region11: #{tpu_custom_call.1} parent=1 // pred_check_branch
      %24 = sbr.rel (0) target = $region13
    $region12: #{tpu_custom_call.1} parent=1 // pred_region
      %26 = dma.done [#allocation4], 256
    $region13: #{tpu_custom_call.1} parent=1 // pred_fallthru
      _
    %s27 = sld [smem:[#allocation2]]
    %v28 = vld [vmem:[#allocation3] sm:$0xff]
    %v29 = vld [vmem:[#allocation3 + $0x8] sm:$0xff]
    %v30 = vstv %s27
    %v31 = vmul.f32 %v30, %v28
    %v32 = vmul.f32 %v30, %v29
    %v33 = vand.u32 2147483647, %v31
    %v34 = vand.u32 2147483647, %v32
    %v35 = vadd.f32 %v33, 1.0
    %v36 = vadd.f32 %v34, 1.0
    %v37 = vrcp.pop %v35
    %v38 = vmul.f32 %v35, %v37
    %v39 = vsub.f32 1.0, %v38
    %v40 = vmul.f32 %v37, %v39
    %v41 = vadd.f32 %v37, %v40
    %vm42 = vweird.f32 %v35
    %vm43 = vweird.f32 %v37
    %vm44 = vmor %vm42, %vm43
    %v45 = vsel %vm44, %v37, %v41
    %v46 = vand.u32 2147483647, %v35
    %vm47 = vcmp.eq.f32.partialorder %v46, 8.507059e+37
    %v48 = vand.u32 %v35, 2147483648
    %v49 = vor.u32 1.1754944e-38, %v48
    %v50 = vsel %vm47, %v49, %v45
    %v51 = vmul.f32 %v28, %v50
    %v52 = vrcp.pop %v36
    %v53 = vmul.f32 %v36, %v52
    %v54 = vsub.f32 1.0, %v53
    %v55 = vmul.f32 %v52, %v54
    %v56 = vadd.f32 %v52, %v55
    %vm57 = vweird.f32 %v36
    %vm58 = vweird.f32 %v52
    %vm59 = vmor %vm57, %vm58
    %v60 = vsel %vm59, %v52, %v56
    %v61 = vand.u32 2147483647, %v36
    %vm62 = vcmp.eq.f32.partialorder %v61, 8.507059e+37
    %v63 = vand.u32 %v36, 2147483648
    %v64 = vor.u32 1.1754944e-38, %v63
    %v65 = vsel %vm62, %v64, %v60
    %v66 = vmul.f32 %v29, %v65
    %67 = vst [vmem:[#allocation6] sm:$0xff] %v51
    %68 = vst [vmem:[#allocation6 + $0x8] sm:$0xff] %v66
    // Predicated region
    $region14: #{tpu_custom_call.1} parent=1 // pred_check
      _
    $region15: #{tpu_custom_call.1} parent=1 // pred_check_branch
      %70 = sbr.rel (0) target = $region17
    $region16: #{tpu_custom_call.1} parent=1 // pred_region
      %72 = vsyncadd [#allocation5], 0
      %s74 = sshll.u32 [#allocation6], 4
      %s75 = int_to_ptr.vmem [resolvable:$true] %s74
      %s76 = sshll.u32 %s2, 4
      %s77 = int_to_ptr.hbm [resolvable:$true] %s76
      %79 = dma.vmem_to_hbm [thread:$0]  %s75, 256, %s77, [#allocation5]
    $region17: #{tpu_custom_call.1} parent=1 // pred_fallthru
      _
    // Predicated region
    $region18: #{tpu_custom_call.1} parent=1 // pred_check
      _
    $region19: #{tpu_custom_call.1} parent=1 // pred_check_branch
      %81 = sbr.rel (0) target = $region21
    $region20: #{tpu_custom_call.1} parent=1 // pred_region
      %83 = dma.done [#allocation5], 256
    $region21: #{tpu_custom_call.1} parent=1 // pred_fallthru
      _
    %84 = vsyncpa [#allocation4], 1
    %85 = vsyncpa [#allocation5], 1

</llo_original>
